<compile_context>
chip_gen: v7x
topology: tpu7x:2x2x1
jax: 0.10.0
libtpu: 0.0.40
codegen_flags: <defaults>
</compile_context>

<pallas_src>
import itertools

import numpy as np
import jax
import jax.numpy as jnp
from jax.experimental import pallas as pl
from jax.experimental.pallas import tpu as pltpu

# ---------------------------------------------------------------------------
# Module configuration (mirrors LagrangeInterp(interp_dim=2, interp_degree=2,
# mesh_bound=[[0,0],[1,1]], mesh_size=[4,4]))
# ---------------------------------------------------------------------------
M = 2                                                        # interp_dim
D = 2                                                        # interp_degree
MESH_BOUND = np.array([[0.0, 0.0], [1.0, 1.0]], np.float32)  # [2, M]
MESH_SIZE = np.array([4, 4], np.int64)                       # [M]
GRID_SHAPE = tuple(int(s) * D + 1 for s in MESH_SIZE)        # coe grid (9, 9)
C = int(np.prod(GRID_SHAPE))                                 # 81 coefficients

LANES = 128                                                  # points per lane row
CHUNK_ROWS = 8                                               # (8,128) = 1 vreg / qty
MAX_BLOCK_ROWS = 64                                          # <=8192 points / step


def _round_up(a, b):
    return (a + b - 1) // b * b


# ---------------------------------------------------------------------------
# Per-dimension nodal weights (lane-dense): W[k] over the 9 global nodes.
# W[k] = 1[e == b] * L_j(s) for the (b, j) with 2b+j = k  (sum over shared
# element-boundary nodes), which makes  out = sum_{k0,k1} coe[k0,k1]*W0*W1
# exactly equal to the reference's per-element corner sum.
# ---------------------------------------------------------------------------
def _nodal_weights(xi, dim):
    lb = float(MESH_BOUND[0, dim])
    ub = float(MESH_BOUND[1, dim])
    ms = float(MESH_SIZE[dim])

    t = jnp.clip((xi - lb) * (ms / (ub - lb)), 0.0, ms)
    e = jnp.minimum(jnp.floor(t), ms - 1.0)          # element index (float)
    s = (t - e) * float(D)                           # local coord in [0, D]

    s1 = s - 1.0
    s2 = s - 2.0
    L = (0.5 * s1 * s2,                              # L0
         -s * s2,                                    # L1
         0.5 * s * s1)                               # L2 (strength-reduced)

    n_nodes = int(ms) * D + 1
    weights = []
    for k in range(n_nodes):
        acc = None
        for b in range(int(ms)):
            j = k - D * b
            if 0 <= j <= D:
                term = jnp.where(e == float(b), L[j], 0.0)
                acc = term if acc is None else acc + term
        weights.append(acc)
    return weights


# ---------------------------------------------------------------------------
# Pallas kernel: one block of (block_rows * 128) points -> interpolated values
# ---------------------------------------------------------------------------
def _lagrange_kernel(x_ref, coe_ref, o_ref):
    # x_ref:   (M, R, 128) f32 VMEM  -- coordinate planes, points on lanes
    # coe_ref: (81,)       f32 SMEM  -- flattened interpolation coefficients
    # o_ref:   (R, 128)    f32 VMEM  -- lane-dense output slab
    rows = o_ref.shape[0]
    n_chunks = rows // CHUNK_ROWS

    # Hoist the 81 scalar coefficient reads out of the chunk loop.
    coe = [coe_ref[k] for k in range(C)]

    for c in range(n_chunks):                        # static unroll, <= 8 chunks
        sl = pl.ds(c * CHUNK_ROWS, CHUNK_ROWS)
        w0 = _nodal_weights(x_ref[0, sl, :], 0)      # 9 nodal weights, dim 0
        w1 = _nodal_weights(x_ref[1, sl, :], 1)      # 9 nodal weights, dim 1

        acc = None
        for r0 in range(GRID_SHAPE[0]):
            inner = coe[r0 * GRID_SHAPE[1]] * w1[0]
            for r1 in range(1, GRID_SHAPE[1]):
                inner = inner + coe[r0 * GRID_SHAPE[1] + r1] * w1[r1]
            term = w0[r0] * inner
            acc = term if acc is None else acc + term

        o_ref[sl, :] = acc                           # full-lane-width store


# ---------------------------------------------------------------------------
# Wrapper (glue: repack points onto lanes, pad, pallas_call, un-pack)
# ---------------------------------------------------------------------------
def lagrange_interp(inputs, interp_coe):
    """inputs: [..., M] f32; interp_coe: GRID_SHAPE-shaped f32. Returns [...]."""
    size = inputs.shape
    x = inputs.reshape(-1, M).astype(jnp.float32)
    n = x.shape[0]

    rows = _round_up(max(-(-n // LANES), CHUNK_ROWS), CHUNK_ROWS)
    # Large lane-dense blocks (2048-8192 points) to amortize per-step pipeline
    # overhead, while keeping >=2 grid steps when there is enough work so the
    # "parallel" axis can shard across v7x's two TensorCores.
    block_rows = min(MAX_BLOCK_ROWS, _round_up(-(-rows // 2), CHUNK_ROWS))
    rows = _round_up(rows, block_rows)
    npts = rows * LANES

    xt = jnp.pad(x, ((0, npts - n), (0, 0)))         # [npts, M]
    xt = xt.T.reshape(M, rows, LANES)                # points on the lane axis

    coe_flat = interp_coe.reshape(-1).astype(jnp.float32)   # (81,) SMEM table

    out = pl.pallas_call(
        _lagrange_kernel,
        out_shape=jax.ShapeDtypeStruct((rows, LANES), jnp.float32),
        grid_spec=pltpu.PrefetchScalarGridSpec(
            num_scalar_prefetch=0,
            grid=(rows // block_rows,),
            in_specs=[
                pl.BlockSpec((M, block_rows, LANES), lambda i: (0, i, 0)),
                pl.BlockSpec(memory_space=pltpu.MemorySpace.SMEM),
            ],
            out_specs=pl.BlockSpec((block_rows, LANES), lambda i: (i, 0)),
        ),
        compiler_params=pltpu.CompilerParams(
            dimension_semantics=("parallel",)),
    )(xt, coe_flat)

    return out.reshape(-1)[:n].reshape(size[:-1])


# ---------------------------------------------------------------------------
# Pure-JAX reference (same math as the PyTorch module, jnp.take gather)
# ---------------------------------------------------------------------------
def lagrange_interp_ref(inputs, interp_coe):
    size = inputs.shape
    x = inputs.reshape(-1, M).astype(jnp.float32)
    coe_flat = interp_coe.reshape(-1).astype(jnp.float32)

    strides = []
    acc_ = 1
    for g in reversed(GRID_SHAPE):
        strides.append(acc_)
        acc_ *= g
    strides = tuple(reversed(strides))

    bases = []
    flat_base = jnp.zeros((x.shape[0],), jnp.int32)
    for i in range(M):
        lb = float(MESH_BOUND[0, i])
        ub = float(MESH_BOUND[1, i])
        ms = float(MESH_SIZE[i])
        t = jnp.clip((x[:, i] - lb) * (ms / (ub - lb)), 0.0, ms)
        e = jnp.minimum(jnp.floor(t), ms - 1.0)
        s = (t - e) * float(D)
        bi = []
        for j in range(D + 1):
            b = jnp.ones_like(s)
            for l in range(D + 1):
                if l != j:
                    b = b * (s - float(l)) * (1.0 / float(j - l))
            bi.append(b)
        bases.append(bi)
        flat_base = flat_base + e.astype(jnp.int32) * (D * strides[i])

    out = jnp.zeros((x.shape[0],), jnp.float32)
    for corner in itertools.product(range(D + 1), repeat=M):
        off = sum(corner[i] * strides[i] for i in range(M))
        wt = bases[0][corner[0]]
        for i in range(1, M):
            wt = wt * bases[i][corner[i]]
        out = out + wt * jnp.take(coe_flat, flat_base + off)
    return out.reshape(size[:-1])


if __name__ == "__main__":
    key = jax.random.PRNGKey(0)
    k_coe, k_x = jax.random.split(key)

    # nn.Parameter interp_coe: shape mesh_size*d+1 = (9, 9), normal init
    interp_coe = jax.random.normal(k_coe, GRID_SHAPE, dtype=jnp.float32)

    # inputs: [..., m] points inside the mesh domain [0, 1]^2
    x = jax.random.uniform(k_x, (2, 16, 16, M), dtype=jnp.float32)

    out = lagrange_interp(x, interp_coe)
    out = jax.block_until_ready(out)

    ref = lagrange_interp_ref(x, interp_coe)
    assert out.shape == x.shape[:-1]
    np.testing.assert_allclose(np.asarray(out), np.asarray(ref),
                               rtol=1e-5, atol=1e-5)

    print("KERNEL_OK")
</pallas_src>

<mosaic_0001>
module attributes {stable_mosaic.version = 11 : i64} {
  func.func @_lagrange_kernel(%arg0: i32, %arg1: memref<2x8x128xf32, #tpu.memory_space<vmem>>, %arg2: memref<81xf32, #tpu.memory_space<smem>>, %arg3: memref<8x128xf32, #tpu.memory_space<vmem>>) attributes {dimension_semantics = [#tpu.dimension_semantics<parallel>], iteration_bounds = array<i64: 1>, scalar_prefetch = 0 : i64, scratch_operands = 0 : i64, tpu.core_type = #tpu.core_type<tc>, window_params = [{transform_indices = @transform_0, window_bounds = array<i64: 2, 8, 128>}, {transform_indices = @transform_1, window_bounds = array<i64: 81>}, {transform_indices = @transform_2, window_bounds = array<i64: 8, 128>}]} {
    %c0 = arith.constant 0 : index
    %0 = memref.load %arg2[%c0] : memref<81xf32, #tpu.memory_space<smem>>
    %c1 = arith.constant 1 : index
    %1 = memref.load %arg2[%c1] : memref<81xf32, #tpu.memory_space<smem>>
    %c2 = arith.constant 2 : index
    %2 = memref.load %arg2[%c2] : memref<81xf32, #tpu.memory_space<smem>>
    %c3 = arith.constant 3 : index
    %3 = memref.load %arg2[%c3] : memref<81xf32, #tpu.memory_space<smem>>
    %c4 = arith.constant 4 : index
    %4 = memref.load %arg2[%c4] : memref<81xf32, #tpu.memory_space<smem>>
    %c5 = arith.constant 5 : index
    %5 = memref.load %arg2[%c5] : memref<81xf32, #tpu.memory_space<smem>>
    %c6 = arith.constant 6 : index
    %6 = memref.load %arg2[%c6] : memref<81xf32, #tpu.memory_space<smem>>
    %c7 = arith.constant 7 : index
    %7 = memref.load %arg2[%c7] : memref<81xf32, #tpu.memory_space<smem>>
    %c8 = arith.constant 8 : index
    %8 = memref.load %arg2[%c8] : memref<81xf32, #tpu.memory_space<smem>>
    %c9 = arith.constant 9 : index
    %9 = memref.load %arg2[%c9] : memref<81xf32, #tpu.memory_space<smem>>
    %c10 = arith.constant 10 : index
    %10 = memref.load %arg2[%c10] : memref<81xf32, #tpu.memory_space<smem>>
    %c11 = arith.constant 11 : index
    %11 = memref.load %arg2[%c11] : memref<81xf32, #tpu.memory_space<smem>>
    %c12 = arith.constant 12 : index
    %12 = memref.load %arg2[%c12] : memref<81xf32, #tpu.memory_space<smem>>
    %c13 = arith.constant 13 : index
    %13 = memref.load %arg2[%c13] : memref<81xf32, #tpu.memory_space<smem>>
    %c14 = arith.constant 14 : index
    %14 = memref.load %arg2[%c14] : memref<81xf32, #tpu.memory_space<smem>>
    %c15 = arith.constant 15 : index
    %15 = memref.load %arg2[%c15] : memref<81xf32, #tpu.memory_space<smem>>
    %c16 = arith.constant 16 : index
    %16 = memref.load %arg2[%c16] : memref<81xf32, #tpu.memory_space<smem>>
    %c17 = arith.constant 17 : index
    %17 = memref.load %arg2[%c17] : memref<81xf32, #tpu.memory_space<smem>>
    %c18 = arith.constant 18 : index
    %18 = memref.load %arg2[%c18] : memref<81xf32, #tpu.memory_space<smem>>
    %c19 = arith.constant 19 : index
    %19 = memref.load %arg2[%c19] : memref<81xf32, #tpu.memory_space<smem>>
    %c20 = arith.constant 20 : index
    %20 = memref.load %arg2[%c20] : memref<81xf32, #tpu.memory_space<smem>>
    %c21 = arith.constant 21 : index
    %21 = memref.load %arg2[%c21] : memref<81xf32, #tpu.memory_space<smem>>
    %c22 = arith.constant 22 : index
    %22 = memref.load %arg2[%c22] : memref<81xf32, #tpu.memory_space<smem>>
    %c23 = arith.constant 23 : index
    %23 = memref.load %arg2[%c23] : memref<81xf32, #tpu.memory_space<smem>>
    %c24 = arith.constant 24 : index
    %24 = memref.load %arg2[%c24] : memref<81xf32, #tpu.memory_space<smem>>
    %c25 = arith.constant 25 : index
    %25 = memref.load %arg2[%c25] : memref<81xf32, #tpu.memory_space<smem>>
    %c26 = arith.constant 26 : index
    %26 = memref.load %arg2[%c26] : memref<81xf32, #tpu.memory_space<smem>>
    %c27 = arith.constant 27 : index
    %27 = memref.load %arg2[%c27] : memref<81xf32, #tpu.memory_space<smem>>
    %c28 = arith.constant 28 : index
    %28 = memref.load %arg2[%c28] : memref<81xf32, #tpu.memory_space<smem>>
    %c29 = arith.constant 29 : index
    %29 = memref.load %arg2[%c29] : memref<81xf32, #tpu.memory_space<smem>>
    %c30 = arith.constant 30 : index
    %30 = memref.load %arg2[%c30] : memref<81xf32, #tpu.memory_space<smem>>
    %c31 = arith.constant 31 : index
    %31 = memref.load %arg2[%c31] : memref<81xf32, #tpu.memory_space<smem>>
    %c32 = arith.constant 32 : index
    %32 = memref.load %arg2[%c32] : memref<81xf32, #tpu.memory_space<smem>>
    %c33 = arith.constant 33 : index
    %33 = memref.load %arg2[%c33] : memref<81xf32, #tpu.memory_space<smem>>
    %c34 = arith.constant 34 : index
    %34 = memref.load %arg2[%c34] : memref<81xf32, #tpu.memory_space<smem>>
    %c35 = arith.constant 35 : index
    %35 = memref.load %arg2[%c35] : memref<81xf32, #tpu.memory_space<smem>>
    %c36 = arith.constant 36 : index
    %36 = memref.load %arg2[%c36] : memref<81xf32, #tpu.memory_space<smem>>
    %c37 = arith.constant 37 : index
    %37 = memref.load %arg2[%c37] : memref<81xf32, #tpu.memory_space<smem>>
    %c38 = arith.constant 38 : index
    %38 = memref.load %arg2[%c38] : memref<81xf32, #tpu.memory_space<smem>>
    %c39 = arith.constant 39 : index
    %39 = memref.load %arg2[%c39] : memref<81xf32, #tpu.memory_space<smem>>
    %c40 = arith.constant 40 : index
    %40 = memref.load %arg2[%c40] : memref<81xf32, #tpu.memory_space<smem>>
    %c41 = arith.constant 41 : index
    %41 = memref.load %arg2[%c41] : memref<81xf32, #tpu.memory_space<smem>>
    %c42 = arith.constant 42 : index
    %42 = memref.load %arg2[%c42] : memref<81xf32, #tpu.memory_space<smem>>
    %c43 = arith.constant 43 : index
    %43 = memref.load %arg2[%c43] : memref<81xf32, #tpu.memory_space<smem>>
    %c44 = arith.constant 44 : index
    %44 = memref.load %arg2[%c44] : memref<81xf32, #tpu.memory_space<smem>>
    %c45 = arith.constant 45 : index
    %45 = memref.load %arg2[%c45] : memref<81xf32, #tpu.memory_space<smem>>
    %c46 = arith.constant 46 : index
    %46 = memref.load %arg2[%c46] : memref<81xf32, #tpu.memory_space<smem>>
    %c47 = arith.constant 47 : index
    %47 = memref.load %arg2[%c47] : memref<81xf32, #tpu.memory_space<smem>>
    %c48 = arith.constant 48 : index
    %48 = memref.load %arg2[%c48] : memref<81xf32, #tpu.memory_space<smem>>
    %c49 = arith.constant 49 : index
    %49 = memref.load %arg2[%c49] : memref<81xf32, #tpu.memory_space<smem>>
    %c50 = arith.constant 50 : index
    %50 = memref.load %arg2[%c50] : memref<81xf32, #tpu.memory_space<smem>>
    %c51 = arith.constant 51 : index
    %51 = memref.load %arg2[%c51] : memref<81xf32, #tpu.memory_space<smem>>
    %c52 = arith.constant 52 : index
    %52 = memref.load %arg2[%c52] : memref<81xf32, #tpu.memory_space<smem>>
    %c53 = arith.constant 53 : index
    %53 = memref.load %arg2[%c53] : memref<81xf32, #tpu.memory_space<smem>>
    %c54 = arith.constant 54 : index
    %54 = memref.load %arg2[%c54] : memref<81xf32, #tpu.memory_space<smem>>
    %c55 = arith.constant 55 : index
    %55 = memref.load %arg2[%c55] : memref<81xf32, #tpu.memory_space<smem>>
    %c56 = arith.constant 56 : index
    %56 = memref.load %arg2[%c56] : memref<81xf32, #tpu.memory_space<smem>>
    %c57 = arith.constant 57 : index
    %57 = memref.load %arg2[%c57] : memref<81xf32, #tpu.memory_space<smem>>
    %c58 = arith.constant 58 : index
    %58 = memref.load %arg2[%c58] : memref<81xf32, #tpu.memory_space<smem>>
    %c59 = arith.constant 59 : index
    %59 = memref.load %arg2[%c59] : memref<81xf32, #tpu.memory_space<smem>>
    %c60 = arith.constant 60 : index
    %60 = memref.load %arg2[%c60] : memref<81xf32, #tpu.memory_space<smem>>
    %c61 = arith.constant 61 : index
    %61 = memref.load %arg2[%c61] : memref<81xf32, #tpu.memory_space<smem>>
    %c62 = arith.constant 62 : index
    %62 = memref.load %arg2[%c62] : memref<81xf32, #tpu.memory_space<smem>>
    %c63 = arith.constant 63 : index
    %63 = memref.load %arg2[%c63] : memref<81xf32, #tpu.memory_space<smem>>
    %c64 = arith.constant 64 : index
    %64 = memref.load %arg2[%c64] : memref<81xf32, #tpu.memory_space<smem>>
    %c65 = arith.constant 65 : index
    %65 = memref.load %arg2[%c65] : memref<81xf32, #tpu.memory_space<smem>>
    %c66 = arith.constant 66 : index
    %66 = memref.load %arg2[%c66] : memref<81xf32, #tpu.memory_space<smem>>
    %c67 = arith.constant 67 : index
    %67 = memref.load %arg2[%c67] : memref<81xf32, #tpu.memory_space<smem>>
    %c68 = arith.constant 68 : index
    %68 = memref.load %arg2[%c68] : memref<81xf32, #tpu.memory_space<smem>>
    %c69 = arith.constant 69 : index
    %69 = memref.load %arg2[%c69] : memref<81xf32, #tpu.memory_space<smem>>
    %c70 = arith.constant 70 : index
    %70 = memref.load %arg2[%c70] : memref<81xf32, #tpu.memory_space<smem>>
    %c71 = arith.constant 71 : index
    %71 = memref.load %arg2[%c71] : memref<81xf32, #tpu.memory_space<smem>>
    %c72 = arith.constant 72 : index
    %72 = memref.load %arg2[%c72] : memref<81xf32, #tpu.memory_space<smem>>
    %c73 = arith.constant 73 : index
    %73 = memref.load %arg2[%c73] : memref<81xf32, #tpu.memory_space<smem>>
    %c74 = arith.constant 74 : index
    %74 = memref.load %arg2[%c74] : memref<81xf32, #tpu.memory_space<smem>>
    %c75 = arith.constant 75 : index
    %75 = memref.load %arg2[%c75] : memref<81xf32, #tpu.memory_space<smem>>
    %c76 = arith.constant 76 : index
    %76 = memref.load %arg2[%c76] : memref<81xf32, #tpu.memory_space<smem>>
    %c77 = arith.constant 77 : index
    %77 = memref.load %arg2[%c77] : memref<81xf32, #tpu.memory_space<smem>>
    %c78 = arith.constant 78 : index
    %78 = memref.load %arg2[%c78] : memref<81xf32, #tpu.memory_space<smem>>
    %c79 = arith.constant 79 : index
    %79 = memref.load %arg2[%c79] : memref<81xf32, #tpu.memory_space<smem>>
    %c80 = arith.constant 80 : index
    %80 = memref.load %arg2[%c80] : memref<81xf32, #tpu.memory_space<smem>>
    %c0_0 = arith.constant 0 : index
    %c0_1 = arith.constant 0 : index
    %c0_2 = arith.constant 0 : index
    %81 = vector.load %arg1[%c0_0, %c0_1, %c0_2] : memref<2x8x128xf32, #tpu.memory_space<vmem>>, vector<1x8x128xf32>
    %82 = vector.shape_cast %81 : vector<1x8x128xf32> to vector<8x128xf32>
    %cst = arith.constant 0.000000e+00 : f32
    %83 = vector.broadcast %cst : f32 to vector<8x128xf32>
    %84 = arith.subf %82, %83 : vector<8x128xf32>
    %cst_3 = arith.constant 4.000000e+00 : f32
    %85 = vector.broadcast %cst_3 : f32 to vector<8x128xf32>
    %86 = arith.mulf %84, %85 : vector<8x128xf32>
    %cst_4 = arith.constant 0.000000e+00 : f32
    %cst_5 = arith.constant 4.000000e+00 : f32
    %87 = vector.broadcast %cst_4 : f32 to vector<8x128xf32>
    %88 = arith.maximumf %87, %86 : vector<8x128xf32>
    %89 = vector.broadcast %cst_5 : f32 to vector<8x128xf32>
    %90 = arith.minimumf %89, %88 : vector<8x128xf32>
    %91 = math.floor %90 : vector<8x128xf32>
    %cst_6 = arith.constant 3.000000e+00 : f32
    %92 = vector.broadcast %cst_6 : f32 to vector<8x128xf32>
    %93 = arith.minimumf %91, %92 : vector<8x128xf32>
    %94 = arith.subf %90, %93 : vector<8x128xf32>
    %cst_7 = arith.constant 2.000000e+00 : f32
    %95 = vector.broadcast %cst_7 : f32 to vector<8x128xf32>
    %96 = arith.mulf %94, %95 : vector<8x128xf32>
    %cst_8 = arith.constant 1.000000e+00 : f32
    %97 = vector.broadcast %cst_8 : f32 to vector<8x128xf32>
    %98 = arith.subf %96, %97 : vector<8x128xf32>
    %cst_9 = arith.constant 2.000000e+00 : f32
    %99 = vector.broadcast %cst_9 : f32 to vector<8x128xf32>
    %100 = arith.subf %96, %99 : vector<8x128xf32>
    %cst_10 = arith.constant 5.000000e-01 : f32
    %101 = vector.broadcast %cst_10 : f32 to vector<8x128xf32>
    %102 = arith.mulf %101, %98 : vector<8x128xf32>
    %103 = arith.mulf %102, %100 : vector<8x128xf32>
    %cst_11 = arith.constant 0.000000e+00 : f32
    %104 = vector.broadcast %cst_11 : f32 to vector<8x128xf32>
    %105 = arith.subf %104, %96 : vector<8x128xf32>
    %106 = arith.mulf %105, %100 : vector<8x128xf32>
    %cst_12 = arith.constant 5.000000e-01 : f32
    %107 = vector.broadcast %cst_12 : f32 to vector<8x128xf32>
    %108 = arith.mulf %107, %96 : vector<8x128xf32>
    %109 = arith.mulf %108, %98 : vector<8x128xf32>
    %cst_13 = arith.constant 0.000000e+00 : f32
    %110 = vector.broadcast %cst_13 : f32 to vector<8x128xf32>
    %111 = arith.cmpf oeq, %93, %110 : vector<8x128xf32>
    %cst_14 = arith.constant 0.000000e+00 : f32
    %112 = vector.broadcast %cst_14 : f32 to vector<8x128xf32>
    %113 = arith.select %111, %103, %112 : vector<8x128xi1>, vector<8x128xf32>
    %cst_15 = arith.constant 0.000000e+00 : f32
    %114 = vector.broadcast %cst_15 : f32 to vector<8x128xf32>
    %115 = arith.cmpf oeq, %93, %114 : vector<8x128xf32>
    %cst_16 = arith.constant 0.000000e+00 : f32
    %116 = vector.broadcast %cst_16 : f32 to vector<8x128xf32>
    %117 = arith.select %115, %106, %116 : vector<8x128xi1>, vector<8x128xf32>
    %cst_17 = arith.constant 0.000000e+00 : f32
    %118 = vector.broadcast %cst_17 : f32 to vector<8x128xf32>
    %119 = arith.cmpf oeq, %93, %118 : vector<8x128xf32>
    %cst_18 = arith.constant 0.000000e+00 : f32
    %120 = vector.broadcast %cst_18 : f32 to vector<8x128xf32>
    %121 = arith.select %119, %109, %120 : vector<8x128xi1>, vector<8x128xf32>
    %cst_19 = arith.constant 1.000000e+00 : f32
    %122 = vector.broadcast %cst_19 : f32 to vector<8x128xf32>
    %123 = arith.cmpf oeq, %93, %122 : vector<8x128xf32>
    %cst_20 = arith.constant 0.000000e+00 : f32
    %124 = vector.broadcast %cst_20 : f32 to vector<8x128xf32>
    %125 = arith.select %123, %103, %124 : vector<8x128xi1>, vector<8x128xf32>
    %126 = arith.addf %121, %125 : vector<8x128xf32>
    %cst_21 = arith.constant 1.000000e+00 : f32
    %127 = vector.broadcast %cst_21 : f32 to vector<8x128xf32>
    %128 = arith.cmpf oeq, %93, %127 : vector<8x128xf32>
    %cst_22 = arith.constant 0.000000e+00 : f32
    %129 = vector.broadcast %cst_22 : f32 to vector<8x128xf32>
    %130 = arith.select %128, %106, %129 : vector<8x128xi1>, vector<8x128xf32>
    %cst_23 = arith.constant 1.000000e+00 : f32
    %131 = vector.broadcast %cst_23 : f32 to vector<8x128xf32>
    %132 = arith.cmpf oeq, %93, %131 : vector<8x128xf32>
    %cst_24 = arith.constant 0.000000e+00 : f32
    %133 = vector.broadcast %cst_24 : f32 to vector<8x128xf32>
    %134 = arith.select %132, %109, %133 : vector<8x128xi1>, vector<8x128xf32>
    %cst_25 = arith.constant 2.000000e+00 : f32
    %135 = vector.broadcast %cst_25 : f32 to vector<8x128xf32>
    %136 = arith.cmpf oeq, %93, %135 : vector<8x128xf32>
    %cst_26 = arith.constant 0.000000e+00 : f32
    %137 = vector.broadcast %cst_26 : f32 to vector<8x128xf32>
    %138 = arith.select %136, %103, %137 : vector<8x128xi1>, vector<8x128xf32>
    %139 = arith.addf %134, %138 : vector<8x128xf32>
    %cst_27 = arith.constant 2.000000e+00 : f32
    %140 = vector.broadcast %cst_27 : f32 to vector<8x128xf32>
    %141 = arith.cmpf oeq, %93, %140 : vector<8x128xf32>
    %cst_28 = arith.constant 0.000000e+00 : f32
    %142 = vector.broadcast %cst_28 : f32 to vector<8x128xf32>
    %143 = arith.select %141, %106, %142 : vector<8x128xi1>, vector<8x128xf32>
    %cst_29 = arith.constant 2.000000e+00 : f32
    %144 = vector.broadcast %cst_29 : f32 to vector<8x128xf32>
    %145 = arith.cmpf oeq, %93, %144 : vector<8x128xf32>
    %cst_30 = arith.constant 0.000000e+00 : f32
    %146 = vector.broadcast %cst_30 : f32 to vector<8x128xf32>
    %147 = arith.select %145, %109, %146 : vector<8x128xi1>, vector<8x128xf32>
    %cst_31 = arith.constant 3.000000e+00 : f32
    %148 = vector.broadcast %cst_31 : f32 to vector<8x128xf32>
    %149 = arith.cmpf oeq, %93, %148 : vector<8x128xf32>
    %cst_32 = arith.constant 0.000000e+00 : f32
    %150 = vector.broadcast %cst_32 : f32 to vector<8x128xf32>
    %151 = arith.select %149, %103, %150 : vector<8x128xi1>, vector<8x128xf32>
    %152 = arith.addf %147, %151 : vector<8x128xf32>
    %cst_33 = arith.constant 3.000000e+00 : f32
    %153 = vector.broadcast %cst_33 : f32 to vector<8x128xf32>
    %154 = arith.cmpf oeq, %93, %153 : vector<8x128xf32>
    %cst_34 = arith.constant 0.000000e+00 : f32
    %155 = vector.broadcast %cst_34 : f32 to vector<8x128xf32>
    %156 = arith.select %154, %106, %155 : vector<8x128xi1>, vector<8x128xf32>
    %cst_35 = arith.constant 3.000000e+00 : f32
    %157 = vector.broadcast %cst_35 : f32 to vector<8x128xf32>
    %158 = arith.cmpf oeq, %93, %157 : vector<8x128xf32>
    %cst_36 = arith.constant 0.000000e+00 : f32
    %159 = vector.broadcast %cst_36 : f32 to vector<8x128xf32>
    %160 = arith.select %158, %109, %159 : vector<8x128xi1>, vector<8x128xf32>
    %c1_37 = arith.constant 1 : index
    %c0_38 = arith.constant 0 : index
    %c0_39 = arith.constant 0 : index
    %161 = vector.load %arg1[%c1_37, %c0_38, %c0_39] : memref<2x8x128xf32, #tpu.memory_space<vmem>>, vector<1x8x128xf32>
    %162 = vector.shape_cast %161 : vector<1x8x128xf32> to vector<8x128xf32>
    %cst_40 = arith.constant 0.000000e+00 : f32
    %163 = vector.broadcast %cst_40 : f32 to vector<8x128xf32>
    %164 = arith.subf %162, %163 : vector<8x128xf32>
    %cst_41 = arith.constant 4.000000e+00 : f32
    %165 = vector.broadcast %cst_41 : f32 to vector<8x128xf32>
    %166 = arith.mulf %164, %165 : vector<8x128xf32>
    %cst_42 = arith.constant 0.000000e+00 : f32
    %cst_43 = arith.constant 4.000000e+00 : f32
    %167 = vector.broadcast %cst_42 : f32 to vector<8x128xf32>
    %168 = arith.maximumf %167, %166 : vector<8x128xf32>
    %169 = vector.broadcast %cst_43 : f32 to vector<8x128xf32>
    %170 = arith.minimumf %169, %168 : vector<8x128xf32>
    %171 = math.floor %170 : vector<8x128xf32>
    %cst_44 = arith.constant 3.000000e+00 : f32
    %172 = vector.broadcast %cst_44 : f32 to vector<8x128xf32>
    %173 = arith.minimumf %171, %172 : vector<8x128xf32>
    %174 = arith.subf %170, %173 : vector<8x128xf32>
    %cst_45 = arith.constant 2.000000e+00 : f32
    %175 = vector.broadcast %cst_45 : f32 to vector<8x128xf32>
    %176 = arith.mulf %174, %175 : vector<8x128xf32>
    %cst_46 = arith.constant 1.000000e+00 : f32
    %177 = vector.broadcast %cst_46 : f32 to vector<8x128xf32>
    %178 = arith.subf %176, %177 : vector<8x128xf32>
    %cst_47 = arith.constant 2.000000e+00 : f32
    %179 = vector.broadcast %cst_47 : f32 to vector<8x128xf32>
    %180 = arith.subf %176, %179 : vector<8x128xf32>
    %cst_48 = arith.constant 5.000000e-01 : f32
    %181 = vector.broadcast %cst_48 : f32 to vector<8x128xf32>
    %182 = arith.mulf %181, %178 : vector<8x128xf32>
    %183 = arith.mulf %182, %180 : vector<8x128xf32>
    %cst_49 = arith.constant 0.000000e+00 : f32
    %184 = vector.broadcast %cst_49 : f32 to vector<8x128xf32>
    %185 = arith.subf %184, %176 : vector<8x128xf32>
    %186 = arith.mulf %185, %180 : vector<8x128xf32>
    %cst_50 = arith.constant 5.000000e-01 : f32
    %187 = vector.broadcast %cst_50 : f32 to vector<8x128xf32>
    %188 = arith.mulf %187, %176 : vector<8x128xf32>
    %189 = arith.mulf %188, %178 : vector<8x128xf32>
    %cst_51 = arith.constant 0.000000e+00 : f32
    %190 = vector.broadcast %cst_51 : f32 to vector<8x128xf32>
    %191 = arith.cmpf oeq, %173, %190 : vector<8x128xf32>
    %cst_52 = arith.constant 0.000000e+00 : f32
    %192 = vector.broadcast %cst_52 : f32 to vector<8x128xf32>
    %193 = arith.select %191, %183, %192 : vector<8x128xi1>, vector<8x128xf32>
    %cst_53 = arith.constant 0.000000e+00 : f32
    %194 = vector.broadcast %cst_53 : f32 to vector<8x128xf32>
    %195 = arith.cmpf oeq, %173, %194 : vector<8x128xf32>
    %cst_54 = arith.constant 0.000000e+00 : f32
    %196 = vector.broadcast %cst_54 : f32 to vector<8x128xf32>
    %197 = arith.select %195, %186, %196 : vector<8x128xi1>, vector<8x128xf32>
    %cst_55 = arith.constant 0.000000e+00 : f32
    %198 = vector.broadcast %cst_55 : f32 to vector<8x128xf32>
    %199 = arith.cmpf oeq, %173, %198 : vector<8x128xf32>
    %cst_56 = arith.constant 0.000000e+00 : f32
    %200 = vector.broadcast %cst_56 : f32 to vector<8x128xf32>
    %201 = arith.select %199, %189, %200 : vector<8x128xi1>, vector<8x128xf32>
    %cst_57 = arith.constant 1.000000e+00 : f32
    %202 = vector.broadcast %cst_57 : f32 to vector<8x128xf32>
    %203 = arith.cmpf oeq, %173, %202 : vector<8x128xf32>
    %cst_58 = arith.constant 0.000000e+00 : f32
    %204 = vector.broadcast %cst_58 : f32 to vector<8x128xf32>
    %205 = arith.select %203, %183, %204 : vector<8x128xi1>, vector<8x128xf32>
    %206 = arith.addf %201, %205 : vector<8x128xf32>
    %cst_59 = arith.constant 1.000000e+00 : f32
    %207 = vector.broadcast %cst_59 : f32 to vector<8x128xf32>
    %208 = arith.cmpf oeq, %173, %207 : vector<8x128xf32>
    %cst_60 = arith.constant 0.000000e+00 : f32
    %209 = vector.broadcast %cst_60 : f32 to vector<8x128xf32>
    %210 = arith.select %208, %186, %209 : vector<8x128xi1>, vector<8x128xf32>
    %cst_61 = arith.constant 1.000000e+00 : f32
    %211 = vector.broadcast %cst_61 : f32 to vector<8x128xf32>
    %212 = arith.cmpf oeq, %173, %211 : vector<8x128xf32>
    %cst_62 = arith.constant 0.000000e+00 : f32
    %213 = vector.broadcast %cst_62 : f32 to vector<8x128xf32>
    %214 = arith.select %212, %189, %213 : vector<8x128xi1>, vector<8x128xf32>
    %cst_63 = arith.constant 2.000000e+00 : f32
    %215 = vector.broadcast %cst_63 : f32 to vector<8x128xf32>
    %216 = arith.cmpf oeq, %173, %215 : vector<8x128xf32>
    %cst_64 = arith.constant 0.000000e+00 : f32
    %217 = vector.broadcast %cst_64 : f32 to vector<8x128xf32>
    %218 = arith.select %216, %183, %217 : vector<8x128xi1>, vector<8x128xf32>
    %219 = arith.addf %214, %218 : vector<8x128xf32>
    %cst_65 = arith.constant 2.000000e+00 : f32
    %220 = vector.broadcast %cst_65 : f32 to vector<8x128xf32>
    %221 = arith.cmpf oeq, %173, %220 : vector<8x128xf32>
    %cst_66 = arith.constant 0.000000e+00 : f32
    %222 = vector.broadcast %cst_66 : f32 to vector<8x128xf32>
    %223 = arith.select %221, %186, %222 : vector<8x128xi1>, vector<8x128xf32>
    %cst_67 = arith.constant 2.000000e+00 : f32
    %224 = vector.broadcast %cst_67 : f32 to vector<8x128xf32>
    %225 = arith.cmpf oeq, %173, %224 : vector<8x128xf32>
    %cst_68 = arith.constant 0.000000e+00 : f32
    %226 = vector.broadcast %cst_68 : f32 to vector<8x128xf32>
    %227 = arith.select %225, %189, %226 : vector<8x128xi1>, vector<8x128xf32>
    %cst_69 = arith.constant 3.000000e+00 : f32
    %228 = vector.broadcast %cst_69 : f32 to vector<8x128xf32>
    %229 = arith.cmpf oeq, %173, %228 : vector<8x128xf32>
    %cst_70 = arith.constant 0.000000e+00 : f32
    %230 = vector.broadcast %cst_70 : f32 to vector<8x128xf32>
    %231 = arith.select %229, %183, %230 : vector<8x128xi1>, vector<8x128xf32>
    %232 = arith.addf %227, %231 : vector<8x128xf32>
    %cst_71 = arith.constant 3.000000e+00 : f32
    %233 = vector.broadcast %cst_71 : f32 to vector<8x128xf32>
    %234 = arith.cmpf oeq, %173, %233 : vector<8x128xf32>
    %cst_72 = arith.constant 0.000000e+00 : f32
    %235 = vector.broadcast %cst_72 : f32 to vector<8x128xf32>
    %236 = arith.select %234, %186, %235 : vector<8x128xi1>, vector<8x128xf32>
    %cst_73 = arith.constant 3.000000e+00 : f32
    %237 = vector.broadcast %cst_73 : f32 to vector<8x128xf32>
    %238 = arith.cmpf oeq, %173, %237 : vector<8x128xf32>
    %cst_74 = arith.constant 0.000000e+00 : f32
    %239 = vector.broadcast %cst_74 : f32 to vector<8x128xf32>
    %240 = arith.select %238, %189, %239 : vector<8x128xi1>, vector<8x128xf32>
    %241 = vector.broadcast %0 : f32 to vector<8x128xf32>
    %242 = arith.mulf %241, %193 : vector<8x128xf32>
    %243 = vector.broadcast %1 : f32 to vector<8x128xf32>
    %244 = arith.mulf %243, %197 : vector<8x128xf32>
    %245 = arith.addf %242, %244 : vector<8x128xf32>
    %246 = vector.broadcast %2 : f32 to vector<8x128xf32>
    %247 = arith.mulf %246, %206 : vector<8x128xf32>
    %248 = arith.addf %245, %247 : vector<8x128xf32>
    %249 = vector.broadcast %3 : f32 to vector<8x128xf32>
    %250 = arith.mulf %249, %210 : vector<8x128xf32>
    %251 = arith.addf %248, %250 : vector<8x128xf32>
    %252 = vector.broadcast %4 : f32 to vector<8x128xf32>
    %253 = arith.mulf %252, %219 : vector<8x128xf32>
    %254 = arith.addf %251, %253 : vector<8x128xf32>
    %255 = vector.broadcast %5 : f32 to vector<8x128xf32>
    %256 = arith.mulf %255, %223 : vector<8x128xf32>
    %257 = arith.addf %254, %256 : vector<8x128xf32>
    %258 = vector.broadcast %6 : f32 to vector<8x128xf32>
    %259 = arith.mulf %258, %232 : vector<8x128xf32>
    %260 = arith.addf %257, %259 : vector<8x128xf32>
    %261 = vector.broadcast %7 : f32 to vector<8x128xf32>
    %262 = arith.mulf %261, %236 : vector<8x128xf32>
    %263 = arith.addf %260, %262 : vector<8x128xf32>
    %264 = vector.broadcast %8 : f32 to vector<8x128xf32>
    %265 = arith.mulf %264, %240 : vector<8x128xf32>
    %266 = arith.addf %263, %265 : vector<8x128xf32>
    %267 = arith.mulf %113, %266 : vector<8x128xf32>
    %268 = vector.broadcast %9 : f32 to vector<8x128xf32>
    %269 = arith.mulf %268, %193 : vector<8x128xf32>
    %270 = vector.broadcast %10 : f32 to vector<8x128xf32>
    %271 = arith.mulf %270, %197 : vector<8x128xf32>
    %272 = arith.addf %269, %271 : vector<8x128xf32>
    %273 = vector.broadcast %11 : f32 to vector<8x128xf32>
    %274 = arith.mulf %273, %206 : vector<8x128xf32>
    %275 = arith.addf %272, %274 : vector<8x128xf32>
    %276 = vector.broadcast %12 : f32 to vector<8x128xf32>
    %277 = arith.mulf %276, %210 : vector<8x128xf32>
    %278 = arith.addf %275, %277 : vector<8x128xf32>
    %279 = vector.broadcast %13 : f32 to vector<8x128xf32>
    %280 = arith.mulf %279, %219 : vector<8x128xf32>
    %281 = arith.addf %278, %280 : vector<8x128xf32>
    %282 = vector.broadcast %14 : f32 to vector<8x128xf32>
    %283 = arith.mulf %282, %223 : vector<8x128xf32>
    %284 = arith.addf %281, %283 : vector<8x128xf32>
    %285 = vector.broadcast %15 : f32 to vector<8x128xf32>
    %286 = arith.mulf %285, %232 : vector<8x128xf32>
    %287 = arith.addf %284, %286 : vector<8x128xf32>
    %288 = vector.broadcast %16 : f32 to vector<8x128xf32>
    %289 = arith.mulf %288, %236 : vector<8x128xf32>
    %290 = arith.addf %287, %289 : vector<8x128xf32>
    %291 = vector.broadcast %17 : f32 to vector<8x128xf32>
    %292 = arith.mulf %291, %240 : vector<8x128xf32>
    %293 = arith.addf %290, %292 : vector<8x128xf32>
    %294 = arith.mulf %117, %293 : vector<8x128xf32>
    %295 = arith.addf %267, %294 : vector<8x128xf32>
    %296 = vector.broadcast %18 : f32 to vector<8x128xf32>
    %297 = arith.mulf %296, %193 : vector<8x128xf32>
    %298 = vector.broadcast %19 : f32 to vector<8x128xf32>
    %299 = arith.mulf %298, %197 : vector<8x128xf32>
    %300 = arith.addf %297, %299 : vector<8x128xf32>
    %301 = vector.broadcast %20 : f32 to vector<8x128xf32>
    %302 = arith.mulf %301, %206 : vector<8x128xf32>
    %303 = arith.addf %300, %302 : vector<8x128xf32>
    %304 = vector.broadcast %21 : f32 to vector<8x128xf32>
    %305 = arith.mulf %304, %210 : vector<8x128xf32>
    %306 = arith.addf %303, %305 : vector<8x128xf32>
    %307 = vector.broadcast %22 : f32 to vector<8x128xf32>
    %308 = arith.mulf %307, %219 : vector<8x128xf32>
    %309 = arith.addf %306, %308 : vector<8x128xf32>
    %310 = vector.broadcast %23 : f32 to vector<8x128xf32>
    %311 = arith.mulf %310, %223 : vector<8x128xf32>
    %312 = arith.addf %309, %311 : vector<8x128xf32>
    %313 = vector.broadcast %24 : f32 to vector<8x128xf32>
    %314 = arith.mulf %313, %232 : vector<8x128xf32>
    %315 = arith.addf %312, %314 : vector<8x128xf32>
    %316 = vector.broadcast %25 : f32 to vector<8x128xf32>
    %317 = arith.mulf %316, %236 : vector<8x128xf32>
    %318 = arith.addf %315, %317 : vector<8x128xf32>
    %319 = vector.broadcast %26 : f32 to vector<8x128xf32>
    %320 = arith.mulf %319, %240 : vector<8x128xf32>
    %321 = arith.addf %318, %320 : vector<8x128xf32>
    %322 = arith.mulf %126, %321 : vector<8x128xf32>
    %323 = arith.addf %295, %322 : vector<8x128xf32>
    %324 = vector.broadcast %27 : f32 to vector<8x128xf32>
    %325 = arith.mulf %324, %193 : vector<8x128xf32>
    %326 = vector.broadcast %28 : f32 to vector<8x128xf32>
    %327 = arith.mulf %326, %197 : vector<8x128xf32>
    %328 = arith.addf %325, %327 : vector<8x128xf32>
    %329 = vector.broadcast %29 : f32 to vector<8x128xf32>
    %330 = arith.mulf %329, %206 : vector<8x128xf32>
    %331 = arith.addf %328, %330 : vector<8x128xf32>
    %332 = vector.broadcast %30 : f32 to vector<8x128xf32>
    %333 = arith.mulf %332, %210 : vector<8x128xf32>
    %334 = arith.addf %331, %333 : vector<8x128xf32>
    %335 = vector.broadcast %31 : f32 to vector<8x128xf32>
    %336 = arith.mulf %335, %219 : vector<8x128xf32>
    %337 = arith.addf %334, %336 : vector<8x128xf32>
    %338 = vector.broadcast %32 : f32 to vector<8x128xf32>
    %339 = arith.mulf %338, %223 : vector<8x128xf32>
    %340 = arith.addf %337, %339 : vector<8x128xf32>
    %341 = vector.broadcast %33 : f32 to vector<8x128xf32>
    %342 = arith.mulf %341, %232 : vector<8x128xf32>
    %343 = arith.addf %340, %342 : vector<8x128xf32>
    %344 = vector.broadcast %34 : f32 to vector<8x128xf32>
    %345 = arith.mulf %344, %236 : vector<8x128xf32>
    %346 = arith.addf %343, %345 : vector<8x128xf32>
    %347 = vector.broadcast %35 : f32 to vector<8x128xf32>
    %348 = arith.mulf %347, %240 : vector<8x128xf32>
    %349 = arith.addf %346, %348 : vector<8x128xf32>
    %350 = arith.mulf %130, %349 : vector<8x128xf32>
    %351 = arith.addf %323, %350 : vector<8x128xf32>
    %352 = vector.broadcast %36 : f32 to vector<8x128xf32>
    %353 = arith.mulf %352, %193 : vector<8x128xf32>
    %354 = vector.broadcast %37 : f32 to vector<8x128xf32>
    %355 = arith.mulf %354, %197 : vector<8x128xf32>
    %356 = arith.addf %353, %355 : vector<8x128xf32>
    %357 = vector.broadcast %38 : f32 to vector<8x128xf32>
    %358 = arith.mulf %357, %206 : vector<8x128xf32>
    %359 = arith.addf %356, %358 : vector<8x128xf32>
    %360 = vector.broadcast %39 : f32 to vector<8x128xf32>
    %361 = arith.mulf %360, %210 : vector<8x128xf32>
    %362 = arith.addf %359, %361 : vector<8x128xf32>
    %363 = vector.broadcast %40 : f32 to vector<8x128xf32>
    %364 = arith.mulf %363, %219 : vector<8x128xf32>
    %365 = arith.addf %362, %364 : vector<8x128xf32>
    %366 = vector.broadcast %41 : f32 to vector<8x128xf32>
    %367 = arith.mulf %366, %223 : vector<8x128xf32>
    %368 = arith.addf %365, %367 : vector<8x128xf32>
    %369 = vector.broadcast %42 : f32 to vector<8x128xf32>
    %370 = arith.mulf %369, %232 : vector<8x128xf32>
    %371 = arith.addf %368, %370 : vector<8x128xf32>
    %372 = vector.broadcast %43 : f32 to vector<8x128xf32>
    %373 = arith.mulf %372, %236 : vector<8x128xf32>
    %374 = arith.addf %371, %373 : vector<8x128xf32>
    %375 = vector.broadcast %44 : f32 to vector<8x128xf32>
    %376 = arith.mulf %375, %240 : vector<8x128xf32>
    %377 = arith.addf %374, %376 : vector<8x128xf32>
    %378 = arith.mulf %139, %377 : vector<8x128xf32>
    %379 = arith.addf %351, %378 : vector<8x128xf32>
    %380 = vector.broadcast %45 : f32 to vector<8x128xf32>
    %381 = arith.mulf %380, %193 : vector<8x128xf32>
    %382 = vector.broadcast %46 : f32 to vector<8x128xf32>
    %383 = arith.mulf %382, %197 : vector<8x128xf32>
    %384 = arith.addf %381, %383 : vector<8x128xf32>
    %385 = vector.broadcast %47 : f32 to vector<8x128xf32>
    %386 = arith.mulf %385, %206 : vector<8x128xf32>
    %387 = arith.addf %384, %386 : vector<8x128xf32>
    %388 = vector.broadcast %48 : f32 to vector<8x128xf32>
    %389 = arith.mulf %388, %210 : vector<8x128xf32>
    %390 = arith.addf %387, %389 : vector<8x128xf32>
    %391 = vector.broadcast %49 : f32 to vector<8x128xf32>
    %392 = arith.mulf %391, %219 : vector<8x128xf32>
    %393 = arith.addf %390, %392 : vector<8x128xf32>
    %394 = vector.broadcast %50 : f32 to vector<8x128xf32>
    %395 = arith.mulf %394, %223 : vector<8x128xf32>
    %396 = arith.addf %393, %395 : vector<8x128xf32>
    %397 = vector.broadcast %51 : f32 to vector<8x128xf32>
    %398 = arith.mulf %397, %232 : vector<8x128xf32>
    %399 = arith.addf %396, %398 : vector<8x128xf32>
    %400 = vector.broadcast %52 : f32 to vector<8x128xf32>
    %401 = arith.mulf %400, %236 : vector<8x128xf32>
    %402 = arith.addf %399, %401 : vector<8x128xf32>
    %403 = vector.broadcast %53 : f32 to vector<8x128xf32>
    %404 = arith.mulf %403, %240 : vector<8x128xf32>
    %405 = arith.addf %402, %404 : vector<8x128xf32>
    %406 = arith.mulf %143, %405 : vector<8x128xf32>
    %407 = arith.addf %379, %406 : vector<8x128xf32>
    %408 = vector.broadcast %54 : f32 to vector<8x128xf32>
    %409 = arith.mulf %408, %193 : vector<8x128xf32>
    %410 = vector.broadcast %55 : f32 to vector<8x128xf32>
    %411 = arith.mulf %410, %197 : vector<8x128xf32>
    %412 = arith.addf %409, %411 : vector<8x128xf32>
    %413 = vector.broadcast %56 : f32 to vector<8x128xf32>
    %414 = arith.mulf %413, %206 : vector<8x128xf32>
    %415 = arith.addf %412, %414 : vector<8x128xf32>
    %416 = vector.broadcast %57 : f32 to vector<8x128xf32>
    %417 = arith.mulf %416, %210 : vector<8x128xf32>
    %418 = arith.addf %415, %417 : vector<8x128xf32>
    %419 = vector.broadcast %58 : f32 to vector<8x128xf32>
    %420 = arith.mulf %419, %219 : vector<8x128xf32>
    %421 = arith.addf %418, %420 : vector<8x128xf32>
    %422 = vector.broadcast %59 : f32 to vector<8x128xf32>
    %423 = arith.mulf %422, %223 : vector<8x128xf32>
    %424 = arith.addf %421, %423 : vector<8x128xf32>
    %425 = vector.broadcast %60 : f32 to vector<8x128xf32>
    %426 = arith.mulf %425, %232 : vector<8x128xf32>
    %427 = arith.addf %424, %426 : vector<8x128xf32>
    %428 = vector.broadcast %61 : f32 to vector<8x128xf32>
    %429 = arith.mulf %428, %236 : vector<8x128xf32>
    %430 = arith.addf %427, %429 : vector<8x128xf32>
    %431 = vector.broadcast %62 : f32 to vector<8x128xf32>
    %432 = arith.mulf %431, %240 : vector<8x128xf32>
    %433 = arith.addf %430, %432 : vector<8x128xf32>
    %434 = arith.mulf %152, %433 : vector<8x128xf32>
    %435 = arith.addf %407, %434 : vector<8x128xf32>
    %436 = vector.broadcast %63 : f32 to vector<8x128xf32>
    %437 = arith.mulf %436, %193 : vector<8x128xf32>
    %438 = vector.broadcast %64 : f32 to vector<8x128xf32>
    %439 = arith.mulf %438, %197 : vector<8x128xf32>
    %440 = arith.addf %437, %439 : vector<8x128xf32>
    %441 = vector.broadcast %65 : f32 to vector<8x128xf32>
    %442 = arith.mulf %441, %206 : vector<8x128xf32>
    %443 = arith.addf %440, %442 : vector<8x128xf32>
    %444 = vector.broadcast %66 : f32 to vector<8x128xf32>
    %445 = arith.mulf %444, %210 : vector<8x128xf32>
    %446 = arith.addf %443, %445 : vector<8x128xf32>
    %447 = vector.broadcast %67 : f32 to vector<8x128xf32>
    %448 = arith.mulf %447, %219 : vector<8x128xf32>
    %449 = arith.addf %446, %448 : vector<8x128xf32>
    %450 = vector.broadcast %68 : f32 to vector<8x128xf32>
    %451 = arith.mulf %450, %223 : vector<8x128xf32>
    %452 = arith.addf %449, %451 : vector<8x128xf32>
    %453 = vector.broadcast %69 : f32 to vector<8x128xf32>
    %454 = arith.mulf %453, %232 : vector<8x128xf32>
    %455 = arith.addf %452, %454 : vector<8x128xf32>
    %456 = vector.broadcast %70 : f32 to vector<8x128xf32>
    %457 = arith.mulf %456, %236 : vector<8x128xf32>
    %458 = arith.addf %455, %457 : vector<8x128xf32>
    %459 = vector.broadcast %71 : f32 to vector<8x128xf32>
    %460 = arith.mulf %459, %240 : vector<8x128xf32>
    %461 = arith.addf %458, %460 : vector<8x128xf32>
    %462 = arith.mulf %156, %461 : vector<8x128xf32>
    %463 = arith.addf %435, %462 : vector<8x128xf32>
    %464 = vector.broadcast %72 : f32 to vector<8x128xf32>
    %465 = arith.mulf %464, %193 : vector<8x128xf32>
    %466 = vector.broadcast %73 : f32 to vector<8x128xf32>
    %467 = arith.mulf %466, %197 : vector<8x128xf32>
    %468 = arith.addf %465, %467 : vector<8x128xf32>
    %469 = vector.broadcast %74 : f32 to vector<8x128xf32>
    %470 = arith.mulf %469, %206 : vector<8x128xf32>
    %471 = arith.addf %468, %470 : vector<8x128xf32>
    %472 = vector.broadcast %75 : f32 to vector<8x128xf32>
    %473 = arith.mulf %472, %210 : vector<8x128xf32>
    %474 = arith.addf %471, %473 : vector<8x128xf32>
    %475 = vector.broadcast %76 : f32 to vector<8x128xf32>
    %476 = arith.mulf %475, %219 : vector<8x128xf32>
    %477 = arith.addf %474, %476 : vector<8x128xf32>
    %478 = vector.broadcast %77 : f32 to vector<8x128xf32>
    %479 = arith.mulf %478, %223 : vector<8x128xf32>
    %480 = arith.addf %477, %479 : vector<8x128xf32>
    %481 = vector.broadcast %78 : f32 to vector<8x128xf32>
    %482 = arith.mulf %481, %232 : vector<8x128xf32>
    %483 = arith.addf %480, %482 : vector<8x128xf32>
    %484 = vector.broadcast %79 : f32 to vector<8x128xf32>
    %485 = arith.mulf %484, %236 : vector<8x128xf32>
    %486 = arith.addf %483, %485 : vector<8x128xf32>
    %487 = vector.broadcast %80 : f32 to vector<8x128xf32>
    %488 = arith.mulf %487, %240 : vector<8x128xf32>
    %489 = arith.addf %486, %488 : vector<8x128xf32>
    %490 = arith.mulf %160, %489 : vector<8x128xf32>
    %491 = arith.addf %463, %490 : vector<8x128xf32>
    %c0_75 = arith.constant 0 : index
    %c0_76 = arith.constant 0 : index
    %492 = vector.load %arg3[%c0_75, %c0_76] : memref<8x128xf32, #tpu.memory_space<vmem>>, vector<8x128xf32>
    tpu.vector_store %arg3[%c0_75, %c0_76], %491 {strides = array<i32>} : memref<8x128xf32, #tpu.memory_space<vmem>>, vector<8x128xf32>,
    return
  }
  func.func @transform_0(%arg0: i32) -> (i32, i32, i32) {
    %c0_i32 = arith.constant 0 : i32
    %c0_i32_0 = arith.constant 0 : i32
    %c0_i32_1 = arith.constant 0 : i32
    return %c0_i32, %arg0, %c0_i32_0 : i32, i32, i32
  }
  func.func @transform_1(%arg0: i32) -> i32 {
    %c0_i32 = arith.constant 0 : i32
    %c0_i32_0 = arith.constant 0 : i32
    return %c0_i32 : i32
  }
  func.func @transform_2(%arg0: i32) -> (i32, i32) {
    %c0_i32 = arith.constant 0 : i32
    %c0_i32_0 = arith.constant 0 : i32
    return %arg0, %c0_i32 : i32, i32
  }
}

</mosaic_0001>

<llo_original>
// kernel: tpu_custom_call.1
$region0: #{tpu_custom_call.1}
  #allocation0 [shape = 'u32[]', space=smem, size = 0x4, offset = 0x4, fixed_abs, tag = 'smem constant byte address 0x4 - core index']
  #allocation1 [shape = 'u32[144,128]{1,0:T(1,128)}', space=vmem, size = 0x12000, scoped, tag = 'internal scratch']
  %s0 = inlined_call_operand.hbm [shape: f32[2,8,128], index: 0, kind: input, shape index: {}]
  %s1 = inlined_call_operand.vmem [shape: f32[81], index: 1, kind: input, shape index: {}]
  %s2 = inlined_call_operand.hbm [shape: f32[8,128], index: 2, kind: output, shape index: {}]
  %s3 = sld [smem:[#allocation0]]
  $region26: #{tpu_custom_call.1} parent=0
    _
  %s5 = ssub.s32 1, %s3
  %s6 = scalar_select 0, %s5, %s3
  $region1: #{tpu_custom_call.1} parent=0
    #allocation2 [shape = 'u8[8192]{0}', space=vmem, size = 0x2000, scoped, tag = 'input window, operand 0, single buffered']
    #allocation3 [shape = 's32[1]{0}', space=sflag, size = 0x4, scoped, tag = 'scoped memory for tpu_custom_call.1']
    #allocation4 [shape = 's32[1]{0}', space=sflag, size = 0x4, scoped, tag = 'scoped memory for tpu_custom_call.1']
    #allocation5 [shape = 's32[1]{0}', space=sflag, size = 0x4, scoped, tag = 'scoped memory for tpu_custom_call.1']
    #allocation6 [shape = 'u8[512]{0}', space=smem, size = 0x200, scoped, tag = 'input window, operand 1, single buffered']
    #allocation7 [shape = 'u8[4096]{0}', space=vmem, size = 0x1000, scoped, tag = 'output window, operand 0, single buffered']
    %7 = vsyncpa [#allocation3], 0
    %8 = vsyncpa [#allocation5], 0
    %9 = vsyncpa [#allocation4], 0
    // Predicated region
    $region2: #{tpu_custom_call.1} parent=1 // pred_check
      _
    $region3: #{tpu_custom_call.1} parent=1 // pred_check_branch
      %11 = sbr.rel (0) target = $region5
    $region4: #{tpu_custom_call.1} parent=1 // pred_region
      %s13 = ssub.s32 256, 256
      %14 = vsyncadd [#allocation3], %s13
      %s15 = sshll.u32 [#allocation2], 4
      %s16 = int_to_ptr.vmem [resolvable:$true] %s15
      %21 = dma.hbm_to_vmem [thread:$0]  %s0, 256, %s16, [#allocation3], 128, 128, 8
    $region5: #{tpu_custom_call.1} parent=1 // pred_fallthru
      _
    // Predicated region
    $region6: #{tpu_custom_call.1} parent=1 // pred_check
      _
    $region7: #{tpu_custom_call.1} parent=1 // pred_check_branch
      %23 = sbr.rel (0) target = $region9
    $region8: #{tpu_custom_call.1} parent=1 // pred_region
      %s25 = ssub.s32 16, 16
      %26 = vsyncadd [#allocation5], %s25
      %s28 = sshll.u32 %s1, 4
      %s29 = int_to_ptr.vmem [resolvable:$true] %s28
      %31 = dma.vmem_to_smem %s29, 16, [#allocation6], [#allocation5]
    $region9: #{tpu_custom_call.1} parent=1 // pred_fallthru
      _
    // Predicated region
    $region10: #{tpu_custom_call.1} parent=1 // pred_check
      _
    $region11: #{tpu_custom_call.1} parent=1 // pred_check_branch
      %33 = sbr.rel (0) target = $region13
    $region12: #{tpu_custom_call.1} parent=1 // pred_region
      %34 = dma.done [#allocation3], 256
    $region13: #{tpu_custom_call.1} parent=1 // pred_fallthru
      _
    // Predicated region
    $region14: #{tpu_custom_call.1} parent=1 // pred_check
      _
    $region15: #{tpu_custom_call.1} parent=1 // pred_check_branch
      %36 = sbr.rel (0) target = $region17
    $region16: #{tpu_custom_call.1} parent=1 // pred_region
      %37 = dma.done [#allocation5], 16
    $region17: #{tpu_custom_call.1} parent=1 // pred_fallthru
      _
    %38 = sfence
    %s39 = sld [smem:[#allocation6]]
    %s40 = sld [smem:[#allocation6 + $0x1]]
    %s41 = sld [smem:[#allocation6 + $0x2]]
    %s42 = sld [smem:[#allocation6 + $0x3]]
    %s43 = sld [smem:[#allocation6 + $0x4]]
    %s44 = sld [smem:[#allocation6 + $0x5]]
    %s45 = sld [smem:[#allocation6 + $0x6]]
    %s46 = sld [smem:[#allocation6 + $0x7]]
    %s47 = sld [smem:[#allocation6 + $0x8]]
    %s48 = sld [smem:[#allocation6 + $0x9]]
    %s49 = sld [smem:[#allocation6 + $0xa]]
    %s50 = sld [smem:[#allocation6 + $0xb]]
    %s51 = sld [smem:[#allocation6 + $0xc]]
    %s52 = sld [smem:[#allocation6 + $0xd]]
    %s53 = sld [smem:[#allocation6 + $0xe]]
    %s54 = sld [smem:[#allocation6 + $0xf]]
    %s55 = sld [smem:[#allocation6 + $0x10]]
    %s56 = sld [smem:[#allocation6 + $0x11]]
    %s57 = sld [smem:[#allocation6 + $0x12]]
    %s58 = sld [smem:[#allocation6 + $0x13]]
    %s59 = sld [smem:[#allocation6 + $0x14]]
    %s60 = sld [smem:[#allocation6 + $0x15]]
    %s61 = sld [smem:[#allocation6 + $0x16]]
    %s62 = sld [smem:[#allocation6 + $0x17]]
    %s63 = sld [smem:[#allocation6 + $0x18]]
    %s64 = sld [smem:[#allocation6 + $0x19]]
    %s65 = sld [smem:[#allocation6 + $0x1a]]
    %s66 = sld [smem:[#allocation6 + $0x1b]]
    %s67 = sld [smem:[#allocation6 + $0x1c]]
    %s68 = sld [smem:[#allocation6 + $0x1d]]
    %s69 = sld [smem:[#allocation6 + $0x1e]]
    %s70 = sld [smem:[#allocation6 + $0x1f]]
    %s71 = sld [smem:[#allocation6 + $0x20]]
    %s72 = sld [smem:[#allocation6 + $0x21]]
    %s73 = sld [smem:[#allocation6 + $0x22]]
    %s74 = sld [smem:[#allocation6 + $0x23]]
    %s75 = sld [smem:[#allocation6 + $0x24]]
    %s76 = sld [smem:[#allocation6 + $0x25]]
    %s77 = sld [smem:[#allocation6 + $0x26]]
    %s78 = sld [smem:[#allocation6 + $0x27]]
    %s79 = sld [smem:[#allocation6 + $0x28]]
    %s80 = sld [smem:[#allocation6 + $0x29]]
    %s81 = sld [smem:[#allocation6 + $0x2a]]
    %s82 = sld [smem:[#allocation6 + $0x2b]]
    %s83 = sld [smem:[#allocation6 + $0x2c]]
    %s84 = sld [smem:[#allocation6 + $0x2d]]
    %s85 = sld [smem:[#allocation6 + $0x2e]]
    %s86 = sld [smem:[#allocation6 + $0x2f]]
    %s87 = sld [smem:[#allocation6 + $0x30]]
    %s88 = sld [smem:[#allocation6 + $0x31]]
    %s89 = sld [smem:[#allocation6 + $0x32]]
    %s90 = sld [smem:[#allocation6 + $0x33]]
    %s91 = sld [smem:[#allocation6 + $0x34]]
    %s92 = sld [smem:[#allocation6 + $0x35]]
    %s93 = sld [smem:[#allocation6 + $0x36]]
    %s94 = sld [smem:[#allocation6 + $0x37]]
    %s95 = sld [smem:[#allocation6 + $0x38]]
    %s96 = sld [smem:[#allocation6 + $0x39]]
    %s97 = sld [smem:[#allocation6 + $0x3a]]
    %s98 = sld [smem:[#allocation6 + $0x3b]]
    %s99 = sld [smem:[#allocation6 + $0x3c]]
    %s100 = sld [smem:[#allocation6 + $0x3d]]
    %s101 = sld [smem:[#allocation6 + $0x3e]]
    %s102 = sld [smem:[#allocation6 + $0x3f]]
    %s103 = sld [smem:[#allocation6 + $0x40]]
    %s104 = sld [smem:[#allocation6 + $0x41]]
    %s105 = sld [smem:[#allocation6 + $0x42]]
    %s106 = sld [smem:[#allocation6 + $0x43]]
    %s107 = sld [smem:[#allocation6 + $0x44]]
    %s108 = sld [smem:[#allocation6 + $0x45]]
    %s109 = sld [smem:[#allocation6 + $0x46]]
    %s110 = sld [smem:[#allocation6 + $0x47]]
    %s111 = sld [smem:[#allocation6 + $0x48]]
    %s112 = sld [smem:[#allocation6 + $0x49]]
    %s113 = sld [smem:[#allocation6 + $0x4a]]
    %s114 = sld [smem:[#allocation6 + $0x4b]]
    %s115 = sld [smem:[#allocation6 + $0x4c]]
    %s116 = sld [smem:[#allocation6 + $0x4d]]
    %s117 = sld [smem:[#allocation6 + $0x4e]]
    %s118 = sld [smem:[#allocation6 + $0x4f]]
    %s119 = sld [smem:[#allocation6 + $0x50]]
    %v120 = vld [vmem:[#allocation2] sm:$0xff]
    %v121 = vmul.f32 %v120, 4.0
    %v122 = vmax.f32 %v121, 0.0
    %v123 = vmin.f32 %v122, 4.0
    %v124 = vfloor.f32 %v123
    %v125 = vmin.f32 %v124, 3.0
    %v126 = vsub.f32 %v123, %v125
    %v127 = vmul.f32 %v126, 2.0
    %v128 = vsub.f32 %v127, 1.0
    %v129 = vsub.f32 %v127, 2.0
    %v130 = vmul.f32 %v128, 0.5
    %v131 = vmul.f32 %v130, %v129
    %v132 = vsub.f32 0.0, %v127
    %v133 = vmul.f32 %v132, %v129
    %v134 = vmul.f32 %v127, 0.5
    %v135 = vmul.f32 %v134, %v128
    %vm136 = vcmp.eq.f32.partialorder %v125, 0.0
    %v137 = vsel %vm136, %v131, 0.0
    %v138 = vsel %vm136, %v133, 0.0
    %v139 = vsel %vm136, %v135, 0.0
    %vm140 = vcmp.eq.f32.partialorder %v125, 1.0
    %v141 = vsel %vm140, %v131, 0.0
    %v142 = vadd.f32 %v139, %v141
    %v143 = vsel %vm140, %v133, 0.0
    %v144 = vsel %vm140, %v135, 0.0
    %vm145 = vcmp.eq.f32.partialorder %v125, 2.0
    %v146 = vsel %vm145, %v131, 0.0
    %v147 = vadd.f32 %v144, %v146
    %v148 = vsel %vm145, %v133, 0.0
    %v149 = vsel %vm145, %v135, 0.0
    %vm150 = vcmp.eq.f32.partialorder %v125, 3.0
    %v151 = vsel %vm150, %v131, 0.0
    %v152 = vadd.f32 %v149, %v151
    %v153 = vsel %vm150, %v133, 0.0
    %v154 = vsel %vm150, %v135, 0.0
    %s155 = scalar_lea.vmem [#allocation2], 8
    %v156 = vld [vmem:[%s155] sm:$0xff]
    %v157 = vmul.f32 %v156, 4.0
    %v158 = vmax.f32 %v157, 0.0
    %v159 = vmin.f32 %v158, 4.0
    %v160 = vfloor.f32 %v159
    %v161 = vmin.f32 %v160, 3.0
    %v162 = vsub.f32 %v159, %v161
    %v163 = vmul.f32 %v162, 2.0
    %v164 = vsub.f32 %v163, 1.0
    %v165 = vsub.f32 %v163, 2.0
    %v166 = vmul.f32 %v164, 0.5
    %v167 = vmul.f32 %v166, %v165
    %v168 = vsub.f32 0.0, %v163
    %v169 = vmul.f32 %v168, %v165
    %v170 = vmul.f32 %v163, 0.5
    %v171 = vmul.f32 %v170, %v164
    %vm172 = vcmp.eq.f32.partialorder %v161, 0.0
    %v173 = vsel %vm172, %v167, 0.0
    %v174 = vsel %vm172, %v169, 0.0
    %v175 = vsel %vm172, %v171, 0.0
    %vm176 = vcmp.eq.f32.partialorder %v161, 1.0
    %v177 = vsel %vm176, %v167, 0.0
    %v178 = vadd.f32 %v175, %v177
    %v179 = vsel %vm176, %v169, 0.0
    %v180 = vsel %vm176, %v171, 0.0
    %vm181 = vcmp.eq.f32.partialorder %v161, 2.0
    %v182 = vsel %vm181, %v167, 0.0
    %v183 = vadd.f32 %v180, %v182
    %v184 = vsel %vm181, %v169, 0.0
    %v185 = vsel %vm181, %v171, 0.0
    %vm186 = vcmp.eq.f32.partialorder %v161, 3.0
    %v187 = vsel %vm186, %v167, 0.0
    %v188 = vadd.f32 %v185, %v187
    %v189 = vsel %vm186, %v169, 0.0
    %v190 = vsel %vm186, %v171, 0.0
    %v191 = vstv %s39
    %v192 = vmul.f32 %v191, %v173
    %v193 = vstv %s40
    %v194 = vmul.f32 %v193, %v174
    %v195 = vadd.f32 %v192, %v194
    %v196 = vstv %s41
    %v197 = vmul.f32 %v196, %v178
    %v198 = vadd.f32 %v195, %v197
    %v199 = vstv %s42
    %v200 = vmul.f32 %v199, %v179
    %v201 = vadd.f32 %v198, %v200
    %v202 = vstv %s43
    %v203 = vmul.f32 %v202, %v183
    %v204 = vadd.f32 %v201, %v203
    %v205 = vstv %s44
    %v206 = vmul.f32 %v205, %v184
    %v207 = vadd.f32 %v204, %v206
    %v208 = vstv %s45
    %v209 = vmul.f32 %v208, %v188
    %v210 = vadd.f32 %v207, %v209
    %v211 = vstv %s46
    %v212 = vmul.f32 %v211, %v189
    %v213 = vadd.f32 %v210, %v212
    %v214 = vstv %s47
    %v215 = vmul.f32 %v214, %v190
    %v216 = vadd.f32 %v213, %v215
    %v217 = vmul.f32 %v137, %v216
    %v218 = vstv %s48
    %v219 = vmul.f32 %v218, %v173
    %v220 = vstv %s49
    %v221 = vmul.f32 %v220, %v174
    %v222 = vadd.f32 %v219, %v221
    %v223 = vstv %s50
    %v224 = vmul.f32 %v223, %v178
    %v225 = vadd.f32 %v222, %v224
    %v226 = vstv %s51
    %v227 = vmul.f32 %v226, %v179
    %v228 = vadd.f32 %v225, %v227
    %v229 = vstv %s52
    %v230 = vmul.f32 %v229, %v183
    %v231 = vadd.f32 %v228, %v230
    %v232 = vstv %s53
    %v233 = vmul.f32 %v232, %v184
    %v234 = vadd.f32 %v231, %v233
    %v235 = vstv %s54
    %v236 = vmul.f32 %v235, %v188
    %v237 = vadd.f32 %v234, %v236
    %v238 = vstv %s55
    %v239 = vmul.f32 %v238, %v189
    %v240 = vadd.f32 %v237, %v239
    %v241 = vstv %s56
    %v242 = vmul.f32 %v241, %v190
    %v243 = vadd.f32 %v240, %v242
    %v244 = vmul.f32 %v138, %v243
    %v245 = vadd.f32 %v217, %v244
    %v246 = vstv %s57
    %v247 = vmul.f32 %v246, %v173
    %v248 = vstv %s58
    %v249 = vmul.f32 %v248, %v174
    %v250 = vadd.f32 %v247, %v249
    %v251 = vstv %s59
    %v252 = vmul.f32 %v251, %v178
    %v253 = vadd.f32 %v250, %v252
    %v254 = vstv %s60
    %v255 = vmul.f32 %v254, %v179
    %v256 = vadd.f32 %v253, %v255
    %v257 = vstv %s61
    %v258 = vmul.f32 %v257, %v183
    %v259 = vadd.f32 %v256, %v258
    %v260 = vstv %s62
    %v261 = vmul.f32 %v260, %v184
    %v262 = vadd.f32 %v259, %v261
    %v263 = vstv %s63
    %v264 = vmul.f32 %v263, %v188
    %v265 = vadd.f32 %v262, %v264
    %v266 = vstv %s64
    %v267 = vmul.f32 %v266, %v189
    %v268 = vadd.f32 %v265, %v267
    %v269 = vstv %s65
    %v270 = vmul.f32 %v269, %v190
    %v271 = vadd.f32 %v268, %v270
    %v272 = vmul.f32 %v142, %v271
    %v273 = vadd.f32 %v245, %v272
    %v274 = vstv %s66
    %v275 = vmul.f32 %v274, %v173
    %v276 = vstv %s67
    %v277 = vmul.f32 %v276, %v174
    %v278 = vadd.f32 %v275, %v277
    %v279 = vstv %s68
    %v280 = vmul.f32 %v279, %v178
    %v281 = vadd.f32 %v278, %v280
    %v282 = vstv %s69
    %v283 = vmul.f32 %v282, %v179
    %v284 = vadd.f32 %v281, %v283
    %v285 = vstv %s70
    %v286 = vmul.f32 %v285, %v183
    %v287 = vadd.f32 %v284, %v286
    %v288 = vstv %s71
    %v289 = vmul.f32 %v288, %v184
    %v290 = vadd.f32 %v287, %v289
    %v291 = vstv %s72
    %v292 = vmul.f32 %v291, %v188
    %v293 = vadd.f32 %v290, %v292
    %v294 = vstv %s73
    %v295 = vmul.f32 %v294, %v189
    %v296 = vadd.f32 %v293, %v295
    %v297 = vstv %s74
    %v298 = vmul.f32 %v297, %v190
    %v299 = vadd.f32 %v296, %v298
    %v300 = vmul.f32 %v143, %v299
    %v301 = vadd.f32 %v273, %v300
    %v302 = vstv %s75
    %v303 = vmul.f32 %v302, %v173
    %v304 = vstv %s76
    %v305 = vmul.f32 %v304, %v174
    %v306 = vadd.f32 %v303, %v305
    %v307 = vstv %s77
    %v308 = vmul.f32 %v307, %v178
    %v309 = vadd.f32 %v306, %v308
    %v310 = vstv %s78
    %v311 = vmul.f32 %v310, %v179
    %v312 = vadd.f32 %v309, %v311
    %v313 = vstv %s79
    %v314 = vmul.f32 %v313, %v183
    %v315 = vadd.f32 %v312, %v314
    %v316 = vstv %s80
    %v317 = vmul.f32 %v316, %v184
    %v318 = vadd.f32 %v315, %v317
    %v319 = vstv %s81
    %v320 = vmul.f32 %v319, %v188
    %v321 = vadd.f32 %v318, %v320
    %v322 = vstv %s82
    %v323 = vmul.f32 %v322, %v189
    %v324 = vadd.f32 %v321, %v323
    %v325 = vstv %s83
    %v326 = vmul.f32 %v325, %v190
    %v327 = vadd.f32 %v324, %v326
    %v328 = vmul.f32 %v147, %v327
    %v329 = vadd.f32 %v301, %v328
    %v330 = vstv %s84
    %v331 = vmul.f32 %v330, %v173
    %v332 = vstv %s85
    %v333 = vmul.f32 %v332, %v174
    %v334 = vadd.f32 %v331, %v333
    %v335 = vstv %s86
    %v336 = vmul.f32 %v335, %v178
    %v337 = vadd.f32 %v334, %v336
    %v338 = vstv %s87
    %v339 = vmul.f32 %v338, %v179
    %v340 = vadd.f32 %v337, %v339
    %v341 = vstv %s88
    %v342 = vmul.f32 %v341, %v183
    %v343 = vadd.f32 %v340, %v342
    %v344 = vstv %s89
    %v345 = vmul.f32 %v344, %v184
    %v346 = vadd.f32 %v343, %v345
    %v347 = vstv %s90
    %v348 = vmul.f32 %v347, %v188
    %v349 = vadd.f32 %v346, %v348
    %v350 = vstv %s91
    %v351 = vmul.f32 %v350, %v189
    %v352 = vadd.f32 %v349, %v351
    %v353 = vstv %s92
    %v354 = vmul.f32 %v353, %v190
    %v355 = vadd.f32 %v352, %v354
    %v356 = vmul.f32 %v148, %v355
    %v357 = vadd.f32 %v329, %v356
    %v358 = vstv %s93
    %v359 = vmul.f32 %v358, %v173
    %v360 = vstv %s94
    %v361 = vmul.f32 %v360, %v174
    %v362 = vadd.f32 %v359, %v361
    %v363 = vstv %s95
    %v364 = vmul.f32 %v363, %v178
    %v365 = vadd.f32 %v362, %v364
    %v366 = vstv %s96
    %v367 = vmul.f32 %v366, %v179
    %v368 = vadd.f32 %v365, %v367
    %v369 = vstv %s97
    %v370 = vmul.f32 %v369, %v183
    %v371 = vadd.f32 %v368, %v370
    %v372 = vstv %s98
    %v373 = vmul.f32 %v372, %v184
    %v374 = vadd.f32 %v371, %v373
    %v375 = vstv %s99
    %v376 = vmul.f32 %v375, %v188
    %v377 = vadd.f32 %v374, %v376
    %v378 = vstv %s100
    %v379 = vmul.f32 %v378, %v189
    %v380 = vadd.f32 %v377, %v379
    %v381 = vstv %s101
    %v382 = vmul.f32 %v381, %v190
    %v383 = vadd.f32 %v380, %v382
    %v384 = vmul.f32 %v152, %v383
    %v385 = vadd.f32 %v357, %v384
    %v386 = vstv %s102
    %v387 = vmul.f32 %v386, %v173
    %v388 = vstv %s103
    %v389 = vmul.f32 %v388, %v174
    %v390 = vadd.f32 %v387, %v389
    %v391 = vstv %s104
    %v392 = vmul.f32 %v391, %v178
    %v393 = vadd.f32 %v390, %v392
    %v394 = vstv %s105
    %v395 = vmul.f32 %v394, %v179
    %v396 = vadd.f32 %v393, %v395
    %v397 = vstv %s106
    %v398 = vmul.f32 %v397, %v183
    %v399 = vadd.f32 %v396, %v398
    %v400 = vstv %s107
    %v401 = vmul.f32 %v400, %v184
    %v402 = vadd.f32 %v399, %v401
    %v403 = vstv %s108
    %v404 = vmul.f32 %v403, %v188
    %v405 = vadd.f32 %v402, %v404
    %v406 = vstv %s109
    %v407 = vmul.f32 %v406, %v189
    %v408 = vadd.f32 %v405, %v407
    %v409 = vstv %s110
    %v410 = vmul.f32 %v409, %v190
    %v411 = vadd.f32 %v408, %v410
    %v412 = vmul.f32 %v153, %v411
    %v413 = vadd.f32 %v385, %v412
    %v414 = vstv %s111
    %v415 = vmul.f32 %v414, %v173
    %v416 = vstv %s112
    %v417 = vmul.f32 %v416, %v174
    %v418 = vadd.f32 %v415, %v417
    %v419 = vstv %s113
    %v420 = vmul.f32 %v419, %v178
    %v421 = vadd.f32 %v418, %v420
    %v422 = vstv %s114
    %v423 = vmul.f32 %v422, %v179
    %v424 = vadd.f32 %v421, %v423
    %v425 = vstv %s115
    %v426 = vmul.f32 %v425, %v183
    %v427 = vadd.f32 %v424, %v426
    %v428 = vstv %s116
    %v429 = vmul.f32 %v428, %v184
    %v430 = vadd.f32 %v427, %v429
    %v431 = vstv %s117
    %v432 = vmul.f32 %v431, %v188
    %v433 = vadd.f32 %v430, %v432
    %v434 = vstv %s118
    %v435 = vmul.f32 %v434, %v189
    %v436 = vadd.f32 %v433, %v435
    %v437 = vstv %s119
    %v438 = vmul.f32 %v437, %v190
    %v439 = vadd.f32 %v436, %v438
    %v440 = vmul.f32 %v154, %v439
    %v441 = vadd.f32 %v413, %v440
    %442 = vst [vmem:[#allocation7] sm:$0xff] %v441
    // Predicated region
    $region18: #{tpu_custom_call.1} parent=1 // pred_check
      _
    $region19: #{tpu_custom_call.1} parent=1 // pred_check_branch
      %444 = sbr.rel (0) target = $region21
    $region20: #{tpu_custom_call.1} parent=1 // pred_region
      %s446 = ssub.s32 128, 128
      %447 = vsyncadd [#allocation4], %s446
      %s449 = sshll.u32 [#allocation7], 4
      %s450 = int_to_ptr.vmem [resolvable:$true] %s449
      %452 = dma.vmem_to_hbm [thread:$0]  %s450, 128, %s2, [#allocation4]
    $region21: #{tpu_custom_call.1} parent=1 // pred_fallthru
      _
    // Predicated region
    $region22: #{tpu_custom_call.1} parent=1 // pred_check
      _
    $region23: #{tpu_custom_call.1} parent=1 // pred_check_branch
      %454 = sbr.rel (0) target = $region25
    $region24: #{tpu_custom_call.1} parent=1 // pred_region
      %455 = dma.done [#allocation4], 128
    $region25: #{tpu_custom_call.1} parent=1 // pred_fallthru
      _
    %456 = vsyncpa [#allocation3], 1
    %457 = vsyncpa [#allocation4], 1
    %458 = vsyncpa [#allocation5], 1

</llo_original>
